<compile_context>
chip_gen: v7x
topology: tpu7x:2x2x1
jax: 0.10.0
libtpu: 0.0.40
codegen_flags: <defaults>
</compile_context>

<pallas_src>
import functools

import jax
import jax.numpy as jnp
from jax.experimental import pallas as pl
from jax.experimental.pallas import tpu as pltpu

LANE = 128      # lane width (last dim)
SUBLANE = 8     # f32 sublane count (second-to-last dim)
MIB = 1024 * 1024


def _round_up(x, m):
    return ((x + m - 1) // m) * m


def _vmem_cap_bytes():
    """Per-core VMEM cap: ~80% of physical, never above 100 MiB.
    v5e/v6e (128 MiB) -> ~100 MiB; v7x (64 MiB) -> ~51 MiB."""
    phys = 64 * MIB  # conservative default (v7x)
    try:
        info = pltpu.get_tpu_info()
        phys = int(getattr(info, "vmem_capacity_bytes", phys) or phys)
    except Exception:
        pass
    return min(int(phys * 0.8), 100 * MIB)


def _pick_block_b(B, requested):
    """Batch tile: 256-multiples when big (256x256 MXU on v6e/v7x), 8-multiples when
    small; shrink to guarantee >=2 grid steps when possible (v7x has 2 TensorCores)."""
    Bp8 = _round_up(max(B, 1), SUBLANE)
    bb = min(_round_up(requested, SUBLANE), Bp8)
    if bb >= 256:
        bb = (bb // 256) * 256
    if Bp8 >= 2 * SUBLANE and Bp8 < 2 * bb:
        half = Bp8 // 2
        bb = (half // 256) * 256 if half >= 256 else _round_up(half, SUBLANE)
        bb = max(bb, SUBLANE)
    return bb


# --------------------------------------------------------------------------------------
# Fused kernel: all three layers in one body, weights VMEM-resident across batch steps.
# --------------------------------------------------------------------------------------
def _fused_mlp_kernel(x_ref, w1_ref, b1_ref, w2_ref, b2_ref, w3_ref, b3_ref, o_ref):
    # Layer 1: Linear(L -> h) + ReLU   (bf16 MXU operands, f32 accumulate / VPU math)
    h1 = jnp.dot(x_ref[...], w1_ref[...], preferred_element_type=jnp.float32)
    h1 = jnp.maximum(h1 + b1_ref[...], 0.0)
    # Layer 2: Linear(h -> h) + ReLU
    h2 = jnp.dot(h1.astype(jnp.bfloat16), w2_ref[...],
                 preferred_element_type=jnp.float32)
    h2 = jnp.maximum(h2 + b2_ref[...], 0.0)
    # Layer 3: Linear(h -> n_params) + sigmoid
    h3 = jnp.dot(h2.astype(jnp.bfloat16), w3_ref[...],
                 preferred_element_type=jnp.float32)
    h3 = jnp.clip(h3 + b3_ref[...], -30.0, 30.0)   # keep exp finite
    # sigmoid = 1 / (1 + exp(-x)): exp -> EUP, approx reciprocal -> EUP (no VPU divide)
    o_ref[...] = pl.reciprocal(1.0 + jnp.exp(-h3), approx=True).astype(o_ref.dtype)


# --------------------------------------------------------------------------------------
# Per-layer fallback: K/N-tiled linear + fused activation (used when the weights do not
# fit VMEM-resident, e.g. large h on v7x's 64 MiB per-TensorCore VMEM).
# --------------------------------------------------------------------------------------
def _linear_act_kernel(x_ref, w_ref, b_ref, o_ref, acc_ref, *, act):
    k = pl.program_id(2)

    @pl.when(k == 0)
    def _():
        acc_ref[...] = jnp.zeros_like(acc_ref)

    acc_ref[...] += jnp.dot(x_ref[...], w_ref[...],
                            preferred_element_type=jnp.float32)

    @pl.when(k == pl.num_programs(2) - 1)
    def _():
        y = acc_ref[...] + b_ref[...]
        if act == "relu":
            y = jnp.maximum(y, 0.0)
        else:  # sigmoid
            y = jnp.clip(y, -30.0, 30.0)
            y = pl.reciprocal(1.0 + jnp.exp(-y), approx=True)
        o_ref[...] = y.astype(o_ref.dtype)


def _linear_act(x, w, b, *, act, out_dtype, tm, tn=512, tk=512):
    M, K = x.shape
    _, N = w.shape
    tm = min(tm, _round_up(M, SUBLANE))
    tn = min(tn, _round_up(N, LANE))
    tk = min(tk, _round_up(K, LANE))
    Mp, Kp, Np = _round_up(M, tm), _round_up(K, tk), _round_up(N, tn)

    xp = jnp.pad(x, ((0, Mp - M), (0, Kp - K))).astype(jnp.bfloat16)
    wp = jnp.pad(w, ((0, Kp - K), (0, Np - N))).astype(jnp.bfloat16)
    bp = jnp.pad(b, ((0, 0), (0, Np - N))).astype(jnp.float32)

    out_bytes = jnp.dtype(out_dtype).itemsize
    vmem = (2 * (tm * tk * 2 + tk * tn * 2 + tn * 4)      # double-buffered inputs
            + 2 * tm * tn * out_bytes                      # double-buffered output
            + tm * tn * 4)                                 # f32 accumulator
    vmem = min(max(int(vmem * 1.25), 16 * MIB), _vmem_cap_bytes())

    out = pl.pallas_call(
        functools.partial(_linear_act_kernel, act=act),
        out_shape=jax.ShapeDtypeStruct((Mp, Np), out_dtype),
        grid_spec=pltpu.PrefetchScalarGridSpec(
            num_scalar_prefetch=0,
            grid=(Mp // tm, Np // tn, Kp // tk),
            in_specs=[
                pl.BlockSpec((tm, tk), lambda i, j, k: (i, k)),
                pl.BlockSpec((tk, tn), lambda i, j, k: (k, j)),
                pl.BlockSpec((1, tn), lambda i, j, k: (0, j)),
            ],
            out_specs=pl.BlockSpec((tm, tn), lambda i, j, k: (i, j)),
            scratch_shapes=[pltpu.VMEM((tm, tn), jnp.float32)],
        ),
        compiler_params=pltpu.CompilerParams(
            dimension_semantics=("parallel", "parallel", "arbitrary"),
            vmem_limit_bytes=vmem,
        ),
    )(xp, wp, bp)
    return out[:M, :N]


# --------------------------------------------------------------------------------------
# Parameter preparation (hoisted out of the per-call path) and the forward wrapper.
# --------------------------------------------------------------------------------------
def prepare_params(w1, b1, w2, b2, w3, b3):
    """Lane-pad feature dims to multiples of 128 and cast MXU operands to bf16 ONCE.
    w_i stored as [in, out]; b_i as [1, out]."""
    L, h = w1.shape
    n_params = w3.shape[1]
    Lp, hp, npp = _round_up(L, LANE), _round_up(h, LANE), _round_up(n_params, LANE)

    def pad2(a, r, c):
        return jnp.pad(a, ((0, r - a.shape[0]), (0, c - a.shape[1])))

    return dict(
        w1=pad2(w1, Lp, hp).astype(jnp.bfloat16),
        w2=pad2(w2, hp, hp).astype(jnp.bfloat16),
        w3=pad2(w3, hp, npp).astype(jnp.bfloat16),
        b1=pad2(b1, 1, hp).astype(jnp.float32),
        b2=pad2(b2, 1, hp).astype(jnp.float32),
        b3=pad2(b3, 1, npp).astype(jnp.float32),
        dims=(L, h, n_params, Lp, hp, npp),
    )


def mlp_forward(x, prepared, *, block_b=512, out_dtype=None, force_per_layer=False):
    """x: [B, L]; prepared = prepare_params(...). Returns [B, n_params]."""
    L, h, n_params, Lp, hp, npp = prepared["dims"]
    B = x.shape[0]
    out_dtype = out_dtype or x.dtype
    out_bytes = jnp.dtype(out_dtype).itemsize

    bb = _pick_block_b(B, block_b)
    Bp = _round_up(B, bb)

    # VMEM accounting for the fused, weights-resident kernel.  Conservatively assume
    # Pallas double-buffers every block (constant index maps included) and count the
    # f32 h1/h2 intermediates the body keeps live in VMEM.
    weight_bytes = 2 * 2 * (Lp * hp + hp * hp + hp * npp)   # bf16, x2 buffers
    bias_bytes = 2 * 4 * (2 * hp + npp)                     # f32,  x2 buffers
    x_tile_bytes = 2 * bb * Lp * 2                          # bf16 input tiles
    o_tile_bytes = 2 * bb * npp * out_bytes                 # output tiles
    inter_bytes = 2 * bb * hp * 4                           # f32 h1 / h2
    fused_budget = int(1.25 * (weight_bytes + bias_bytes + x_tile_bytes
                               + o_tile_bytes + inter_bytes))
    cap = _vmem_cap_bytes()

    if force_per_layer or fused_budget > cap:
        # Weights too large to keep VMEM-resident: three tiled linear+act kernels.
        xp = jnp.pad(x, ((0, 0), (0, Lp - L))).astype(jnp.bfloat16)
        a1 = _linear_act(xp, prepared["w1"], prepared["b1"], act="relu",
                         out_dtype=jnp.bfloat16, tm=bb)
        a2 = _linear_act(a1, prepared["w2"], prepared["b2"], act="relu",
                         out_dtype=jnp.bfloat16, tm=bb)
        a3 = _linear_act(a2, prepared["w3"], prepared["b3"], act="sigmoid",
                         out_dtype=out_dtype, tm=bb)
        return a3[:, :n_params]

    # Fused path: batch tiled ("parallel" grid axis), weights resident via constant
    # index maps.
    xp = jnp.pad(x, ((0, Bp - B), (0, Lp - L))).astype(jnp.bfloat16)
    full = lambda shape: pl.BlockSpec(shape, lambda i: (0, 0))
    vmem_limit = min(max(fused_budget, 16 * MIB), cap)

    out = pl.pallas_call(
        _fused_mlp_kernel,
        out_shape=jax.ShapeDtypeStruct((Bp, npp), out_dtype),
        grid_spec=pl.GridSpec(
            grid=(Bp // bb,),
            in_specs=[
                pl.BlockSpec((bb, Lp), lambda i: (i, 0)),   # x tile over batch
                full((Lp, hp)),   # w1
                full((1, hp)),    # b1
                full((hp, hp)),   # w2
                full((1, hp)),    # b2
                full((hp, npp)),  # w3
                full((1, npp)),   # b3
            ],
            out_specs=pl.BlockSpec((bb, npp), lambda i: (i, 0)),
        ),
        compiler_params=pltpu.CompilerParams(
            dimension_semantics=("parallel",),
            vmem_limit_bytes=vmem_limit,
        ),
    )(xp, prepared["w1"], prepared["b1"], prepared["w2"], prepared["b2"],
      prepared["w3"], prepared["b3"])

    return out[:B, :n_params]


# --------------------------------------------------------------------------------------
# Init / reference / test
# --------------------------------------------------------------------------------------
def init_params(key, L, n_params, h, dtype=jnp.float32):
    """Mimics nn.Linear's uniform(-1/sqrt(in), 1/sqrt(in)); weights stored [in, out]."""
    keys = jax.random.split(key, 6)

    def linear(kw, kb, fan_in, fan_out):
        bound = 1.0 / jnp.sqrt(fan_in)
        w = jax.random.uniform(kw, (fan_in, fan_out), dtype, -bound, bound)
        b = jax.random.uniform(kb, (1, fan_out), dtype, -bound, bound)
        return w, b

    w1, b1 = linear(keys[0], keys[1], L, h)
    w2, b2 = linear(keys[2], keys[3], h, h)
    w3, b3 = linear(keys[4], keys[5], h, n_params)
    return w1, b1, w2, b2, w3, b3


def mlp_reference(x, w1, b1, w2, b2, w3, b3):
    h1 = jnp.maximum(x @ w1 + b1, 0.0)
    h2 = jnp.maximum(h1 @ w2 + b2, 0.0)
    return jax.nn.sigmoid(h2 @ w3 + b3)


if __name__ == "__main__":
    # Small shapes consistent with MLP(L, n_params, h)
    B, L, h, n_params = 8, 16, 32, 4

    key = jax.random.PRNGKey(0)
    kx, kp = jax.random.split(key)
    x = jax.random.normal(kx, (B, L), jnp.float32)
    params = init_params(kp, L, n_params, h)
    prepared = prepare_params(*params)   # one-time pad + bf16 cast (hoisted)

    ref = mlp_reference(x, *params)

    # Fused (weights VMEM-resident) path.
    out = jax.block_until_ready(mlp_forward(x, prepared))
    assert out.shape == (B, n_params), out.shape
    assert jnp.allclose(out, ref, atol=2e-2, rtol=2e-2), "fused mismatch vs reference"

    # Per-layer tiled fallback path (used automatically for large h / v7x VMEM).
    out_pl = jax.block_until_ready(mlp_forward(x, prepared, force_per_layer=True))
    assert out_pl.shape == (B, n_params), out_pl.shape
    assert jnp.allclose(out_pl, ref, atol=2e-2, rtol=2e-2), "per-layer mismatch vs reference"

    print("KERNEL_OK")
</pallas_src>

<mosaic_0001>
module attributes {stable_mosaic.version = 11 : i64} {
  func.func @_fused_mlp_kernel(%arg0: i32, %arg1: memref<8x128xbf16, #tpu.memory_space<vmem>>, %arg2: memref<128x128xbf16, #tpu.memory_space<vmem>>, %arg3: memref<1x128xf32, #tpu.memory_space<vmem>>, %arg4: memref<128x128xbf16, #tpu.memory_space<vmem>>, %arg5: memref<1x128xf32, #tpu.memory_space<vmem>>, %arg6: memref<128x128xbf16, #tpu.memory_space<vmem>>, %arg7: memref<1x128xf32, #tpu.memory_space<vmem>>, %arg8: memref<8x128xf32, #tpu.memory_space<vmem>>) attributes {dimension_semantics = [#tpu.dimension_semantics<parallel>], iteration_bounds = array<i64: 1>, scalar_prefetch = 0 : i64, scratch_operands = 0 : i64, tpu.core_type = #tpu.core_type<tc>, window_params = [{transform_indices = @transform_0, window_bounds = array<i64: 8, 128>}, {pipeline_mode = #tpu.pipeline_mode<synchronous>, transform_indices = @transform_1, window_bounds = array<i64: 128, 128>}, {pipeline_mode = #tpu.pipeline_mode<synchronous>, transform_indices = @transform_2, window_bounds = array<i64: 1, 128>}, {pipeline_mode = #tpu.pipeline_mode<synchronous>, transform_indices = @transform_3, window_bounds = array<i64: 128, 128>}, {pipeline_mode = #tpu.pipeline_mode<synchronous>, transform_indices = @transform_4, window_bounds = array<i64: 1, 128>}, {pipeline_mode = #tpu.pipeline_mode<synchronous>, transform_indices = @transform_5, window_bounds = array<i64: 128, 128>}, {pipeline_mode = #tpu.pipeline_mode<synchronous>, transform_indices = @transform_6, window_bounds = array<i64: 1, 128>}, {transform_indices = @transform_7, window_bounds = array<i64: 8, 128>}]} {
    %c0 = arith.constant 0 : index
    %c0_0 = arith.constant 0 : index
    %0 = vector.load %arg1[%c0, %c0_0] : memref<8x128xbf16, #tpu.memory_space<vmem>>, vector<8x128xbf16>
    %c0_1 = arith.constant 0 : index
    %c0_2 = arith.constant 0 : index
    %1 = vector.load %arg2[%c0_1, %c0_2] : memref<128x128xbf16, #tpu.memory_space<vmem>>, vector<128x128xbf16>
    %cst = arith.constant dense<0.000000e+00> : vector<8x128xf32>
    %2 = tpu.matmul %0, %1, %cst {dimension_numbers = #tpu.dot_dimension_numbers<[1], [0], [0], [1], [0, 0, 1, 1], [], []>} : vector<8x128xbf16>, vector<128x128xbf16>, vector<8x128xf32> -> vector<8x128xf32>
    %c0_3 = arith.constant 0 : index
    %c0_4 = arith.constant 0 : index
    %3 = vector.load %arg3[%c0_3, %c0_4] : memref<1x128xf32, #tpu.memory_space<vmem>>, vector<1x128xf32>
    %4 = vector.broadcast %3 : vector<1x128xf32> to vector<8x128xf32>
    %5 = arith.addf %2, %4 : vector<8x128xf32>
    %cst_5 = arith.constant 0.000000e+00 : f32
    %6 = vector.broadcast %cst_5 : f32 to vector<8x128xf32>
    %7 = arith.maximumf %5, %6 : vector<8x128xf32>
    %8 = arith.truncf %7 : vector<8x128xf32> to vector<8x128xbf16>
    %c0_6 = arith.constant 0 : index
    %c0_7 = arith.constant 0 : index
    %9 = vector.load %arg4[%c0_6, %c0_7] : memref<128x128xbf16, #tpu.memory_space<vmem>>, vector<128x128xbf16>
    %cst_8 = arith.constant dense<0.000000e+00> : vector<8x128xf32>
    %10 = tpu.matmul %8, %9, %cst_8 {dimension_numbers = #tpu.dot_dimension_numbers<[1], [0], [0], [1], [0, 0, 1, 1], [], []>} : vector<8x128xbf16>, vector<128x128xbf16>, vector<8x128xf32> -> vector<8x128xf32>
    %c0_9 = arith.constant 0 : index
    %c0_10 = arith.constant 0 : index
    %11 = vector.load %arg5[%c0_9, %c0_10] : memref<1x128xf32, #tpu.memory_space<vmem>>, vector<1x128xf32>
    %12 = vector.broadcast %11 : vector<1x128xf32> to vector<8x128xf32>
    %13 = arith.addf %10, %12 : vector<8x128xf32>
    %cst_11 = arith.constant 0.000000e+00 : f32
    %14 = vector.broadcast %cst_11 : f32 to vector<8x128xf32>
    %15 = arith.maximumf %13, %14 : vector<8x128xf32>
    %16 = arith.truncf %15 : vector<8x128xf32> to vector<8x128xbf16>
    %c0_12 = arith.constant 0 : index
    %c0_13 = arith.constant 0 : index
    %17 = vector.load %arg6[%c0_12, %c0_13] : memref<128x128xbf16, #tpu.memory_space<vmem>>, vector<128x128xbf16>
    %cst_14 = arith.constant dense<0.000000e+00> : vector<8x128xf32>
    %18 = tpu.matmul %16, %17, %cst_14 {dimension_numbers = #tpu.dot_dimension_numbers<[1], [0], [0], [1], [0, 0, 1, 1], [], []>} : vector<8x128xbf16>, vector<128x128xbf16>, vector<8x128xf32> -> vector<8x128xf32>
    %c0_15 = arith.constant 0 : index
    %c0_16 = arith.constant 0 : index
    %19 = vector.load %arg7[%c0_15, %c0_16] : memref<1x128xf32, #tpu.memory_space<vmem>>, vector<1x128xf32>
    %20 = vector.broadcast %19 : vector<1x128xf32> to vector<8x128xf32>
    %21 = arith.addf %18, %20 : vector<8x128xf32>
    %cst_17 = arith.constant -3.000000e+01 : f32
    %cst_18 = arith.constant 3.000000e+01 : f32
    %22 = vector.broadcast %cst_17 : f32 to vector<8x128xf32>
    %23 = arith.maximumf %22, %21 : vector<8x128xf32>
    %24 = vector.broadcast %cst_18 : f32 to vector<8x128xf32>
    %25 = arith.minimumf %24, %23 : vector<8x128xf32>
    %cst_19 = arith.constant 0.000000e+00 : f32
    %26 = vector.broadcast %cst_19 : f32 to vector<8x128xf32>
    %27 = arith.subf %26, %25 : vector<8x128xf32>
    %28 = math.exp %27 : vector<8x128xf32>
    %cst_20 = arith.constant 1.000000e+00 : f32
    %29 = vector.broadcast %cst_20 : f32 to vector<8x128xf32>
    %30 = arith.addf %29, %28 : vector<8x128xf32>
    %31 = tpu.reciprocal %30 {approx = true} : vector<8x128xf32> -> vector<8x128xf32>
    %c0_21 = arith.constant 0 : index
    %c0_22 = arith.constant 0 : index
    %32 = vector.load %arg8[%c0_21, %c0_22] : memref<8x128xf32, #tpu.memory_space<vmem>>, vector<8x128xf32>
    tpu.vector_store %arg8[%c0_21, %c0_22], %31 {strides = array<i32>} : memref<8x128xf32, #tpu.memory_space<vmem>>, vector<8x128xf32>,
    return
  }
  func.func @transform_0(%arg0: i32) -> (i32, i32) {
    %c0_i32 = arith.constant 0 : i32
    %c0_i32_0 = arith.constant 0 : i32
    return %arg0, %c0_i32 : i32, i32
  }
  func.func @transform_1(%arg0: i32) -> (i32, i32) {
    %c0_i32 = arith.constant 0 : i32
    %c0_i32_0 = arith.constant 0 : i32
    %c0_i32_1 = arith.constant 0 : i32
    return %c0_i32, %c0_i32_0 : i32, i32
  }
  func.func @transform_2(%arg0: i32) -> (i32, i32) {
    %c0_i32 = arith.constant 0 : i32
    %c0_i32_0 = arith.constant 0 : i32
    %c0_i32_1 = arith.constant 0 : i32
    return %c0_i32, %c0_i32_0 : i32, i32
  }
  func.func @transform_3(%arg0: i32) -> (i32, i32) {
    %c0_i32 = arith.constant 0 : i32
    %c0_i32_0 = arith.constant 0 : i32
    %c0_i32_1 = arith.constant 0 : i32
    return %c0_i32, %c0_i32_0 : i32, i32
  }
  func.func @transform_4(%arg0: i32) -> (i32, i32) {
    %c0_i32 = arith.constant 0 : i32
    %c0_i32_0 = arith.constant 0 : i32
    %c0_i32_1 = arith.constant 0 : i32
    return %c0_i32, %c0_i32_0 : i32, i32
  }
  func.func @transform_5(%arg0: i32) -> (i32, i32) {
    %c0_i32 = arith.constant 0 : i32
    %c0_i32_0 = arith.constant 0 : i32
    %c0_i32_1 = arith.constant 0 : i32
    return %c0_i32, %c0_i32_0 : i32, i32
  }
  func.func @transform_6(%arg0: i32) -> (i32, i32) {
    %c0_i32 = arith.constant 0 : i32
    %c0_i32_0 = arith.constant 0 : i32
    %c0_i32_1 = arith.constant 0 : i32
    return %c0_i32, %c0_i32_0 : i32, i32
  }
  func.func @transform_7(%arg0: i32) -> (i32, i32) {
    %c0_i32 = arith.constant 0 : i32
    %c0_i32_0 = arith.constant 0 : i32
    return %arg0, %c0_i32 : i32, i32
  }
}

</mosaic_0001>

<llo_original>
// kernel: tpu_custom_call.1
$region0: #{tpu_custom_call.1}
  #allocation0 [shape = 'u32[]', space=smem, size = 0x4, offset = 0x4, fixed_abs, tag = 'smem constant byte address 0x4 - core index']
  #allocation1 [shape = 'u32[144,128]{1,0:T(1,128)}', space=vmem, size = 0x12000, scoped, tag = 'internal scratch']
  %s0 = inlined_call_operand.hbm [shape: bf16[8,128], index: 0, kind: input, shape index: {}]
  %s1 = inlined_call_operand.hbm [shape: bf16[128,128], index: 1, kind: input, shape index: {}]
  %s2 = inlined_call_operand.vmem [shape: f32[1,128], index: 2, kind: input, shape index: {}]
  %s3 = inlined_call_operand.hbm [shape: bf16[128,128], index: 3, kind: input, shape index: {}]
  %s4 = inlined_call_operand.vmem [shape: f32[1,128], index: 4, kind: input, shape index: {}]
  %s5 = inlined_call_operand.hbm [shape: bf16[128,128], index: 5, kind: input, shape index: {}]
  %s6 = inlined_call_operand.vmem [shape: f32[1,128], index: 6, kind: input, shape index: {}]
  %s7 = inlined_call_operand.hbm [shape: f32[8,128], index: 7, kind: output, shape index: {}]
  %s8 = sld [smem:[#allocation0]]
  $region54: #{tpu_custom_call.1} parent=0
    _
  %s10 = ssub.s32 1, %s8
  %s11 = scalar_select 0, %s10, %s8
  $region1: #{tpu_custom_call.1} parent=0
    #allocation2 [shape = 'u8[2048]{0}', space=vmem, size = 0x800, scoped, tag = 'input window, operand 0, single buffered']
    #allocation3 [shape = 's32[1]{0}', space=sflag, size = 0x4, scoped, tag = 'scoped memory for tpu_custom_call.1']
    #allocation4 [shape = 's32[1]{0}', space=sflag, size = 0x4, scoped, tag = 'scoped memory for tpu_custom_call.1']
    #allocation5 [shape = 'u8[32768]{0}', space=vmem, size = 0x8000, scoped, tag = 'input window, operand 1, single buffered']
    #allocation6 [shape = 's32[1]{0}', space=sflag, size = 0x4, scoped, tag = 'scoped memory for tpu_custom_call.1']
    #allocation7 [shape = 'u8[32768]{0}', space=vmem, size = 0x8000, scoped, tag = 'input window, operand 3, single buffered']
    #allocation8 [shape = 'u8[32768]{0}', space=vmem, size = 0x8000, scoped, tag = 'input window, operand 5, single buffered']
    #allocation9 [shape = 's32[1]{0}', space=sflag, size = 0x4, scoped, tag = 'scoped memory for tpu_custom_call.1']
    #allocation10 [shape = 'u8[4096]{0}', space=vmem, size = 0x1000, scoped, tag = 'output window, operand 0, single buffered']
    %12 = vsyncpa [#allocation3], 0
    %13 = vsyncpa [#allocation6], 0
    %14 = vsyncpa [#allocation9], 0
    %15 = vsyncpa [#allocation4], 0
    // Predicated region
    $region2: #{tpu_custom_call.1} parent=1 // pred_check
      _
    $region3: #{tpu_custom_call.1} parent=1 // pred_check_branch
      %17 = sbr.rel (0) target = $region5
    $region4: #{tpu_custom_call.1} parent=1 // pred_region
      %s19 = ssub.s32 64, 64
      %20 = vsyncadd [#allocation3], %s19
      %s22 = sshll.u32 [#allocation2], 4
      %s23 = int_to_ptr.vmem [resolvable:$true] %s22
      %25 = dma.hbm_to_vmem [thread:$0]  %s0, 64, %s23, [#allocation3]
    $region5: #{tpu_custom_call.1} parent=1 // pred_fallthru
      _
    // Predicated region
    $region6: #{tpu_custom_call.1} parent=1 // pred_check
      _
    $region7: #{tpu_custom_call.1} parent=1 // pred_check_branch
      %27 = sbr.rel (0) target = $region9
    $region8: #{tpu_custom_call.1} parent=1 // pred_region
      %s29 = ssub.s32 1024, 1024
      %30 = vsyncadd [#allocation6], %s29
      %s31 = sshll.u32 [#allocation5], 4
      %s32 = int_to_ptr.vmem [resolvable:$true] %s31
      %37 = dma.hbm_to_vmem [thread:$0]  %s1, 1024, %s32, [#allocation6], 64, 64, 4
    $region9: #{tpu_custom_call.1} parent=1 // pred_fallthru
      _
    // Predicated region
    $region10: #{tpu_custom_call.1} parent=1 // pred_check
      _
    $region11: #{tpu_custom_call.1} parent=1 // pred_check_branch
      %39 = sbr.rel (0) target = $region13
    $region12: #{tpu_custom_call.1} parent=1 // pred_region
      _
    $region13: #{tpu_custom_call.1} parent=1 // pred_fallthru
      _
    // Predicated region
    $region14: #{tpu_custom_call.1} parent=1 // pred_check
      _
    $region15: #{tpu_custom_call.1} parent=1 // pred_check_branch
      %41 = sbr.rel (0) target = $region17
    $region16: #{tpu_custom_call.1} parent=1 // pred_region
      %s43 = ssub.s32 1024, 1024
      %44 = vsyncadd [#allocation6], %s43
      %s45 = sshll.u32 [#allocation7], 4
      %s46 = int_to_ptr.vmem [resolvable:$true] %s45
      %51 = dma.hbm_to_vmem [thread:$0]  %s3, 1024, %s46, [#allocation6], 64, 64, 4
    $region17: #{tpu_custom_call.1} parent=1 // pred_fallthru
      _
    // Predicated region
    $region18: #{tpu_custom_call.1} parent=1 // pred_check
      _
    $region19: #{tpu_custom_call.1} parent=1 // pred_check_branch
      %53 = sbr.rel (0) target = $region21
    $region20: #{tpu_custom_call.1} parent=1 // pred_region
      _
    $region21: #{tpu_custom_call.1} parent=1 // pred_fallthru
      _
    // Predicated region
    $region22: #{tpu_custom_call.1} parent=1 // pred_check
      _
    $region23: #{tpu_custom_call.1} parent=1 // pred_check_branch
      %55 = sbr.rel (0) target = $region25
    $region24: #{tpu_custom_call.1} parent=1 // pred_region
      %s57 = ssub.s32 1024, 1024
      %58 = vsyncadd [#allocation9], %s57
      %s59 = sshll.u32 [#allocation8], 4
      %s60 = int_to_ptr.vmem [resolvable:$true] %s59
      %65 = dma.hbm_to_vmem [thread:$0]  %s5, 1024, %s60, [#allocation9], 64, 64, 4
    $region25: #{tpu_custom_call.1} parent=1 // pred_fallthru
      _
    // Predicated region
    $region26: #{tpu_custom_call.1} parent=1 // pred_check
      _
    $region27: #{tpu_custom_call.1} parent=1 // pred_check_branch
      %67 = sbr.rel (0) target = $region29
    $region28: #{tpu_custom_call.1} parent=1 // pred_region
      _
    $region29: #{tpu_custom_call.1} parent=1 // pred_fallthru
      _
    // Predicated region
    $region30: #{tpu_custom_call.1} parent=1 // pred_check
      _
    $region31: #{tpu_custom_call.1} parent=1 // pred_check_branch
      %69 = sbr.rel (0) target = $region33
    $region32: #{tpu_custom_call.1} parent=1 // pred_region
      %70 = dma.done [#allocation3], 64
    $region33: #{tpu_custom_call.1} parent=1 // pred_fallthru
      _
    // Predicated region
    $region34: #{tpu_custom_call.1} parent=1 // pred_check
      _
    $region35: #{tpu_custom_call.1} parent=1 // pred_check_branch
      %72 = sbr.rel (0) target = $region37
    $region36: #{tpu_custom_call.1} parent=1 // pred_region
      %73 = dma.done [#allocation6], 1024
    $region37: #{tpu_custom_call.1} parent=1 // pred_fallthru
      _
    // Predicated region
    $region38: #{tpu_custom_call.1} parent=1 // pred_check
      _
    $region39: #{tpu_custom_call.1} parent=1 // pred_check_branch
      %75 = sbr.rel (0) target = $region41
    $region40: #{tpu_custom_call.1} parent=1 // pred_region
      %76 = dma.done [#allocation6], 1024
    $region41: #{tpu_custom_call.1} parent=1 // pred_fallthru
      _
    // Predicated region
    $region42: #{tpu_custom_call.1} parent=1 // pred_check
      _
    $region43: #{tpu_custom_call.1} parent=1 // pred_check_branch
      %78 = sbr.rel (0) target = $region45
    $region44: #{tpu_custom_call.1} parent=1 // pred_region
      %79 = dma.done [#allocation9], 1024
    $region45: #{tpu_custom_call.1} parent=1 // pred_fallthru
      _
    %v81 = vld [vmem:[#allocation2] sm:$0xf]
    %v82 = vld [vmem:[#allocation5] sm:$0xf]
    %v83 = vld [vmem:[#allocation5 + $0x4] sm:$0xf]
    %v84 = vld [vmem:[#allocation5 + $0x8] sm:$0xf]
    %v85 = vld [vmem:[#allocation5 + $0xc] sm:$0xf]
    %v86 = vld [vmem:[#allocation5 + $0x10] sm:$0xf]
    %v87 = vld [vmem:[#allocation5 + $0x14] sm:$0xf]
    %v88 = vld [vmem:[#allocation5 + $0x18] sm:$0xf]
    %v89 = vld [vmem:[#allocation5 + $0x1c] sm:$0xf]
    %v90 = vld [vmem:[#allocation5 + $0x20] sm:$0xf]
    %v91 = vld [vmem:[#allocation5 + $0x24] sm:$0xf]
    %v92 = vld [vmem:[#allocation5 + $0x28] sm:$0xf]
    %v93 = vld [vmem:[#allocation5 + $0x2c] sm:$0xf]
    %v94 = vld [vmem:[#allocation5 + $0x30] sm:$0xf]
    %v95 = vld [vmem:[#allocation5 + $0x34] sm:$0xf]
    %v96 = vld [vmem:[#allocation5 + $0x38] sm:$0xf]
    %v97 = vld [vmem:[#allocation5 + $0x3c] sm:$0xf]
    %v98 = vld [vmem:[%s2] sm:$0x1]
    %v100 = vlaneseq
    %v101 = vshrl.u32 %v100, 7
    %v102 = vsub.s32 0, %v101
    %v103 = vrot.slane %v98, %v102
    %v121 = vunpack.c.l.b16 %v82
    %v122 = vunpack.c.l.b16 %v83
    %v123 = vunpack.c.l.b16 %v84
    %v124 = vunpack.c.l.b16 %v85
    %v125 = vunpack.c.l.b16 %v86
    %v126 = vunpack.c.l.b16 %v87
    %v127 = vunpack.c.l.b16 %v88
    %v128 = vunpack.c.l.b16 %v89
    %v129 = vunpack.c.l.b16 %v90
    %v130 = vunpack.c.l.b16 %v91
    %v131 = vunpack.c.l.b16 %v92
    %v132 = vunpack.c.l.b16 %v93
    %v133 = vunpack.c.l.b16 %v94
    %v134 = vunpack.c.l.b16 %v95
    %v135 = vunpack.c.l.b16 %v96
    %v136 = vunpack.c.l.b16 %v97
    %v137 = vpack.c.b16 %v122, %v121
    %v138 = vpack.c.b16 %v124, %v123
    %v139 = vpack.c.b16 %v126, %v125
    %v140 = vpack.c.b16 %v128, %v127
    %v141 = vpack.c.b16 %v130, %v129
    %v142 = vpack.c.b16 %v132, %v131
    %v143 = vpack.c.b16 %v134, %v133
    %v144 = vpack.c.b16 %v136, %v135
    %153 = vmatprep.subr.bf16.mxu0 0
    %154 = vmatpush1.bf16.msra.mxu0 %v137
    %155 = vmatprep.subr.bf16.mxu0 0
    %156 = vmatpush1.bf16.msra.mxu0 %v138
    %157 = vmatprep.subr.bf16.mxu0 0
    %158 = vmatpush1.bf16.msra.mxu0 %v139
    %159 = vmatprep.subr.bf16.mxu0 0
    %160 = vmatpush1.bf16.msra.mxu0 %v140
    %161 = vmatprep.subr.bf16.mxu0 0
    %162 = vmatpush1.bf16.msra.mxu0 %v141
    %163 = vmatprep.subr.bf16.mxu0 0
    %164 = vmatpush1.bf16.msra.mxu0 %v142
    %165 = vmatprep.subr.bf16.mxu0 0
    %166 = vmatpush1.bf16.msra.mxu0 %v143
    %167 = vmatprep.subr.bf16.mxu0 0
    %168 = vmatpush1.bf16.msra.mxu0 %v144
    %169 = vmatprep.subr.bf16.mxu0 0
    %170 = vmatpush1.bf16.msra.mxu0 0
    %171 = vmatprep.subr.bf16.mxu0 0
    %172 = vmatpush1.bf16.msra.mxu0 0
    %173 = vmatprep.subr.bf16.mxu0 0
    %174 = vmatpush1.bf16.msra.mxu0 0
    %175 = vmatprep.subr.bf16.mxu0 0
    %176 = vmatpush1.bf16.msra.mxu0 0
    %177 = vmatprep.subr.bf16.mxu0 0
    %178 = vmatpush1.bf16.msra.mxu0 0
    %179 = vmatprep.subr.bf16.mxu0 0
    %180 = vmatpush1.bf16.msra.mxu0 0
    %181 = vmatprep.subr.bf16.mxu0 0
    %182 = vmatpush1.bf16.msra.mxu0 0
    %183 = vmatprep.subr.bf16.mxu0 0
    %184 = vmatpush1.bf16.msra.mxu0 0
    %185 = vmatprep.mubr.bf16.mxu0 0
    %186 = vmatmul.mubr.bf16.gmra.mrb[0].mxu0 %v81
    %v187 = vpop.f32.mrb[0].mxu0
    %v188 = vadd.f32 %v103, %v187
    %v189 = vpop.f32.mrb[0].mxu0
    %v190 = vpop.f32.mrb[0].mxu0
    %v191 = vpop.f32.mrb[0].mxu0
    %192 = vdwg.mxu0
    %v193 = vmax.f32 %v188, 0.0
    %v194 = vpack.c.bf16 %v193, %v193
    %v195 = vld [vmem:[#allocation7] sm:$0xf]
    %v196 = vld [vmem:[#allocation7 + $0x4] sm:$0xf]
    %v197 = vld [vmem:[#allocation7 + $0x8] sm:$0xf]
    %v198 = vld [vmem:[#allocation7 + $0xc] sm:$0xf]
    %v199 = vld [vmem:[#allocation7 + $0x10] sm:$0xf]
    %v200 = vld [vmem:[#allocation7 + $0x14] sm:$0xf]
    %v201 = vld [vmem:[#allocation7 + $0x18] sm:$0xf]
    %v202 = vld [vmem:[#allocation7 + $0x1c] sm:$0xf]
    %v203 = vld [vmem:[#allocation7 + $0x20] sm:$0xf]
    %v204 = vld [vmem:[#allocation7 + $0x24] sm:$0xf]
    %v205 = vld [vmem:[#allocation7 + $0x28] sm:$0xf]
    %v206 = vld [vmem:[#allocation7 + $0x2c] sm:$0xf]
    %v207 = vld [vmem:[#allocation7 + $0x30] sm:$0xf]
    %v208 = vld [vmem:[#allocation7 + $0x34] sm:$0xf]
    %v209 = vld [vmem:[#allocation7 + $0x38] sm:$0xf]
    %v210 = vld [vmem:[#allocation7 + $0x3c] sm:$0xf]
    %v211 = vld [vmem:[%s4] sm:$0x1]
    %v213 = vlaneseq
    %v214 = vshrl.u32 %v213, 7
    %v215 = vsub.s32 0, %v214
    %v216 = vrot.slane %v211, %v215
    %v234 = vunpack.c.l.b16 %v195
    %v235 = vunpack.c.l.b16 %v196
    %v236 = vunpack.c.l.b16 %v197
    %v237 = vunpack.c.l.b16 %v198
    %v238 = vunpack.c.l.b16 %v199
    %v239 = vunpack.c.l.b16 %v200
    %v240 = vunpack.c.l.b16 %v201
    %v241 = vunpack.c.l.b16 %v202
    %v242 = vunpack.c.l.b16 %v203
    %v243 = vunpack.c.l.b16 %v204
    %v244 = vunpack.c.l.b16 %v205
    %v245 = vunpack.c.l.b16 %v206
    %v246 = vunpack.c.l.b16 %v207
    %v247 = vunpack.c.l.b16 %v208
    %v248 = vunpack.c.l.b16 %v209
    %v249 = vunpack.c.l.b16 %v210
    %v250 = vpack.c.b16 %v235, %v234
    %v251 = vpack.c.b16 %v237, %v236
    %v252 = vpack.c.b16 %v239, %v238
    %v253 = vpack.c.b16 %v241, %v240
    %v254 = vpack.c.b16 %v243, %v242
    %v255 = vpack.c.b16 %v245, %v244
    %v256 = vpack.c.b16 %v247, %v246
    %v257 = vpack.c.b16 %v249, %v248
    %266 = vmatprep.subr.bf16.mxu0 0
    %267 = vmatpush1.bf16.msra.mxu0 %v250
    %268 = vmatprep.subr.bf16.mxu0 0
    %269 = vmatpush1.bf16.msra.mxu0 %v251
    %270 = vmatprep.subr.bf16.mxu0 0
    %271 = vmatpush1.bf16.msra.mxu0 %v252
    %272 = vmatprep.subr.bf16.mxu0 0
    %273 = vmatpush1.bf16.msra.mxu0 %v253
    %274 = vmatprep.subr.bf16.mxu0 0
    %275 = vmatpush1.bf16.msra.mxu0 %v254
    %276 = vmatprep.subr.bf16.mxu0 0
    %277 = vmatpush1.bf16.msra.mxu0 %v255
    %278 = vmatprep.subr.bf16.mxu0 0
    %279 = vmatpush1.bf16.msra.mxu0 %v256
    %280 = vmatprep.subr.bf16.mxu0 0
    %281 = vmatpush1.bf16.msra.mxu0 %v257
    %282 = vmatprep.subr.bf16.mxu0 0
    %283 = vmatpush1.bf16.msra.mxu0 0
    %284 = vmatprep.subr.bf16.mxu0 0
    %285 = vmatpush1.bf16.msra.mxu0 0
    %286 = vmatprep.subr.bf16.mxu0 0
    %287 = vmatpush1.bf16.msra.mxu0 0
    %288 = vmatprep.subr.bf16.mxu0 0
    %289 = vmatpush1.bf16.msra.mxu0 0
    %290 = vmatprep.subr.bf16.mxu0 0
    %291 = vmatpush1.bf16.msra.mxu0 0
    %292 = vmatprep.subr.bf16.mxu0 0
    %293 = vmatpush1.bf16.msra.mxu0 0
    %294 = vmatprep.subr.bf16.mxu0 0
    %295 = vmatpush1.bf16.msra.mxu0 0
    %296 = vmatprep.subr.bf16.mxu0 0
    %297 = vmatpush1.bf16.msra.mxu0 0
    %298 = vmatprep.mubr.bf16.mxu0 0
    %299 = vmatmul.mubr.bf16.gmra.mrb[0].mxu0 %v194
    %v300 = vpop.f32.mrb[0].mxu0
    %v301 = vadd.f32 %v216, %v300
    %v302 = vpop.f32.mrb[0].mxu0
    %v303 = vpop.f32.mrb[0].mxu0
    %v304 = vpop.f32.mrb[0].mxu0
    %305 = vdwg.mxu0
    %v306 = vmax.f32 %v301, 0.0
    %v307 = vpack.c.bf16 %v306, %v306
    %v308 = vld [vmem:[#allocation8] sm:$0xf]
    %v309 = vld [vmem:[#allocation8 + $0x4] sm:$0xf]
    %v310 = vld [vmem:[#allocation8 + $0x8] sm:$0xf]
    %v311 = vld [vmem:[#allocation8 + $0xc] sm:$0xf]
    %v312 = vld [vmem:[#allocation8 + $0x10] sm:$0xf]
    %v313 = vld [vmem:[#allocation8 + $0x14] sm:$0xf]
    %v314 = vld [vmem:[#allocation8 + $0x18] sm:$0xf]
    %v315 = vld [vmem:[#allocation8 + $0x1c] sm:$0xf]
    %v316 = vld [vmem:[#allocation8 + $0x20] sm:$0xf]
    %v317 = vld [vmem:[#allocation8 + $0x24] sm:$0xf]
    %v318 = vld [vmem:[#allocation8 + $0x28] sm:$0xf]
    %v319 = vld [vmem:[#allocation8 + $0x2c] sm:$0xf]
    %v320 = vld [vmem:[#allocation8 + $0x30] sm:$0xf]
    %v321 = vld [vmem:[#allocation8 + $0x34] sm:$0xf]
    %v322 = vld [vmem:[#allocation8 + $0x38] sm:$0xf]
    %v323 = vld [vmem:[#allocation8 + $0x3c] sm:$0xf]
    %v324 = vld [vmem:[%s6] sm:$0x1]
    %v326 = vlaneseq
    %v327 = vshrl.u32 %v326, 7
    %v328 = vsub.s32 0, %v327
    %v329 = vrot.slane %v324, %v328
    %v347 = vunpack.c.l.b16 %v308
    %v348 = vunpack.c.l.b16 %v309
    %v349 = vunpack.c.l.b16 %v310
    %v350 = vunpack.c.l.b16 %v311
    %v351 = vunpack.c.l.b16 %v312
    %v352 = vunpack.c.l.b16 %v313
    %v353 = vunpack.c.l.b16 %v314
    %v354 = vunpack.c.l.b16 %v315
    %v355 = vunpack.c.l.b16 %v316
    %v356 = vunpack.c.l.b16 %v317
    %v357 = vunpack.c.l.b16 %v318
    %v358 = vunpack.c.l.b16 %v319
    %v359 = vunpack.c.l.b16 %v320
    %v360 = vunpack.c.l.b16 %v321
    %v361 = vunpack.c.l.b16 %v322
    %v362 = vunpack.c.l.b16 %v323
    %v363 = vpack.c.b16 %v348, %v347
    %v364 = vpack.c.b16 %v350, %v349
    %v365 = vpack.c.b16 %v352, %v351
    %v366 = vpack.c.b16 %v354, %v353
    %v367 = vpack.c.b16 %v356, %v355
    %v368 = vpack.c.b16 %v358, %v357
    %v369 = vpack.c.b16 %v360, %v359
    %v370 = vpack.c.b16 %v362, %v361
    %379 = vmatprep.subr.bf16.mxu0 0
    %380 = vmatpush1.bf16.msra.mxu0 %v363
    %381 = vmatprep.subr.bf16.mxu0 0
    %382 = vmatpush1.bf16.msra.mxu0 %v364
    %383 = vmatprep.subr.bf16.mxu0 0
    %384 = vmatpush1.bf16.msra.mxu0 %v365
    %385 = vmatprep.subr.bf16.mxu0 0
    %386 = vmatpush1.bf16.msra.mxu0 %v366
    %387 = vmatprep.subr.bf16.mxu0 0
    %388 = vmatpush1.bf16.msra.mxu0 %v367
    %389 = vmatprep.subr.bf16.mxu0 0
    %390 = vmatpush1.bf16.msra.mxu0 %v368
    %391 = vmatprep.subr.bf16.mxu0 0
    %392 = vmatpush1.bf16.msra.mxu0 %v369
    %393 = vmatprep.subr.bf16.mxu0 0
    %394 = vmatpush1.bf16.msra.mxu0 %v370
    %395 = vmatprep.subr.bf16.mxu0 0
    %396 = vmatpush1.bf16.msra.mxu0 0
    %397 = vmatprep.subr.bf16.mxu0 0
    %398 = vmatpush1.bf16.msra.mxu0 0
    %399 = vmatprep.subr.bf16.mxu0 0
    %400 = vmatpush1.bf16.msra.mxu0 0
    %401 = vmatprep.subr.bf16.mxu0 0
    %402 = vmatpush1.bf16.msra.mxu0 0
    %403 = vmatprep.subr.bf16.mxu0 0
    %404 = vmatpush1.bf16.msra.mxu0 0
    %405 = vmatprep.subr.bf16.mxu0 0
    %406 = vmatpush1.bf16.msra.mxu0 0
    %407 = vmatprep.subr.bf16.mxu0 0
    %408 = vmatpush1.bf16.msra.mxu0 0
    %409 = vmatprep.subr.bf16.mxu0 0
    %410 = vmatpush1.bf16.msra.mxu0 0
    %411 = vmatprep.mubr.bf16.mxu0 0
    %412 = vmatmul.mubr.bf16.gmra.mrb[0].mxu0 %v307
    %v413 = vpop.f32.mrb[0].mxu0
    %v414 = vadd.f32 %v329, %v413
    %v415 = vpop.f32.mrb[0].mxu0
    %v416 = vpop.f32.mrb[0].mxu0
    %v417 = vpop.f32.mrb[0].mxu0
    %418 = vdwg.mxu0
    %v419 = vmax.f32 %v414, -30.0
    %v420 = vmin.f32 %v419, 30.0
    %v421 = vsub.f32 0.0, %v420
    %v422 = vmul.f32 %v421, 1.442695
    %v423 = vpow.pop %v422
    %v424 = vadd.f32 %v423, 1.0
    %v425 = vrcp.pop %v424
    %426 = vst [vmem:[#allocation10] sm:$0xff] %v425
    // Predicated region
    $region46: #{tpu_custom_call.1} parent=1 // pred_check
      _
    $region47: #{tpu_custom_call.1} parent=1 // pred_check_branch
      %428 = sbr.rel (0) target = $region49
    $region48: #{tpu_custom_call.1} parent=1 // pred_region
      %s430 = ssub.s32 128, 128
      %431 = vsyncadd [#allocation4], %s430
      %s433 = sshll.u32 [#allocation10], 4
      %s434 = int_to_ptr.vmem [resolvable:$true] %s433
      %436 = dma.vmem_to_hbm [thread:$0]  %s434, 128, %s7, [#allocation4]
    $region49: #{tpu_custom_call.1} parent=1 // pred_fallthru
      _
    // Predicated region
    $region50: #{tpu_custom_call.1} parent=1 // pred_check
      _
    $region51: #{tpu_custom_call.1} parent=1 // pred_check_branch
      %438 = sbr.rel (0) target = $region53
    $region52: #{tpu_custom_call.1} parent=1 // pred_region
      %439 = dma.done [#allocation4], 128
    $region53: #{tpu_custom_call.1} parent=1 // pred_fallthru
      _
    %440 = vsyncpa [#allocation3], 1
    %441 = vsyncpa [#allocation6], 1
    %442 = vsyncpa [#allocation9], 1
    %443 = vsyncpa [#allocation4], 1

</llo_original>
